<compile_context>
chip_gen: v5e
topology: v5e:2x2
jax: 0.10.0
libtpu: 0.0.40
codegen_flags: <defaults>
</compile_context>

<pallas_src>
import jax
import jax.numpy as jnp
from jax.experimental import pallas as pl
from jax.experimental.pallas import tpu as pltpu


def _round_up(n, m):
    return ((n + m - 1) // m) * m


def mlp_kernel(x_ref, w1_ref, b1_ref, w2_ref, b2_ref, o_ref, h_ref):
    # x_ref : (TB, S*Dp)  bf16, b-major rows, col = s*Dp + d (zero-padded)
    # w1_ref: (Dp, Hp)    bf16          b1_ref: (1, Hp)   f32
    # w2_ref: (S*Hp, Op)  bf16          b2_ref: (1, Op)   f32
    # o_ref : (TB, Op)    f32
    # h_ref : (TB, S*Hp)  bf16 VMEM scratch (flattened activation)
    Dp, Hp = w1_ref.shape
    S = x_ref.shape[1] // Dp

    # fc1: S independent, tile-aligned matmuls. Each per-s result is written
    # straight into its 128-aligned lane slice of the scratch, building the
    # b-major flattened activation (TB, S*Hp) with no cross-lane relayout.
    for s in range(S):
        h_s = jnp.dot(x_ref[:, s * Dp:(s + 1) * Dp], w1_ref[...],
                      preferred_element_type=jnp.float32)        # (TB, Hp) f32
        h_s = jnp.maximum(h_s + b1_ref[...], 0.0)                # f32 epilogue
        h_ref[:, s * Hp:(s + 1) * Hp] = h_s.astype(h_ref.dtype)  # -> bf16

    # fc2: one long-K (K = S*Hp) MXU contraction + bias, lane-dense f32 store.
    out = jnp.dot(h_ref[...], w2_ref[...], preferred_element_type=jnp.float32)
    o_ref[...] = out + b2_ref[...]


def make_mlp_forward(w1, b1, w2, b2, sequence_length, *, block_rows=512):
    """w1: (H, D), b1: (H,), w2: (O, S*H), b2: (O,)  (PyTorch Linear layouts).

    Returns a jitted forward(x) for x of shape (B, S, D). Padded / bf16
    parameters are prepared once here and cached via closure.
    """
    H, D = w1.shape
    O = w2.shape[0]
    S = sequence_length
    assert w2.shape[1] == S * H

    Dp = _round_up(D, 128)     # lane-aligned fc1 contraction dim
    Hp = _round_up(H, 128)     # lane-aligned hidden dim
    Op = _round_up(O, 128)     # lane-dense output dim

    # ---- parameters: padded, transposed, flattened, cast -- built ONCE ----
    w1p = jnp.pad(jnp.transpose(w1), ((0, Dp - D), (0, Hp - H)))           # (Dp, Hp)
    w1p = w1p.astype(jnp.bfloat16)
    b1p = jnp.pad(b1, (0, Hp - H)).astype(jnp.float32).reshape(1, Hp)      # (1, Hp)
    w2p = jnp.pad(jnp.transpose(w2).reshape(S, H, O),
                  ((0, 0), (0, Hp - H), (0, Op - O)))                      # (S, Hp, Op)
    w2p = w2p.reshape(S * Hp, Op).astype(jnp.bfloat16)                     # (S*Hp, Op)
    b2p = jnp.pad(b2, (0, Op - O)).astype(jnp.float32).reshape(1, Op)      # (1, Op)

    @jax.jit
    def forward(x):
        B = x.shape[0]
        assert x.shape[1] == S and x.shape[2] == D
        TB = min(block_rows, _round_up(B, 8))      # batch tile (multiple of 8)
        Bp = _round_up(B, TB)

        # Layout plumbing only: zero-pad batch rows and D, then a FREE
        # contiguous reshape to b-major flat rows (no transpose of x).
        x_p = jnp.pad(x, ((0, Bp - B), (0, 0), (0, Dp - D)))
        x_flat = x_p.reshape(Bp, S * Dp).astype(jnp.bfloat16)

        out_p = pl.pallas_call(
            mlp_kernel,
            out_shape=jax.ShapeDtypeStruct((Bp, Op), jnp.float32),
            grid_spec=pltpu.PrefetchScalarGridSpec(
                num_scalar_prefetch=0,
                grid=(Bp // TB,),
                in_specs=[
                    pl.BlockSpec((TB, S * Dp), lambda i: (i, 0)),   # streamed
                    pl.BlockSpec((Dp, Hp), lambda i: (0, 0)),       # resident
                    pl.BlockSpec((1, Hp), lambda i: (0, 0)),        # resident
                    pl.BlockSpec((S * Hp, Op), lambda i: (0, 0)),   # resident
                    pl.BlockSpec((1, Op), lambda i: (0, 0)),        # resident
                ],
                out_specs=pl.BlockSpec((TB, Op), lambda i: (i, 0)),
                scratch_shapes=[pltpu.VMEM((TB, S * Hp), jnp.bfloat16)],
            ),
            compiler_params=pltpu.CompilerParams(
                dimension_semantics=("parallel",),        # megacore batch split
                vmem_limit_bytes=48 * 1024 * 1024,        # < v7x 64 MiB VMEM
            ),
        )(x_flat, w1p, b1p, w2p, b2p)

        # Padded rows carry relu(b1) garbage but never mix with real rows;
        # padded output columns are exactly zero.  Slice both off.
        return out_p[:B, :O]

    return forward


if __name__ == "__main__":
    # Small shapes consistent with the module.
    B, S, D = 2, 8, 50          # batch, sequence_length, input_dim
    H, O = 32, 2                # hidden_dim, output_dim

    key = jax.random.PRNGKey(0)
    kx, kw1, kb1, kw2, kb2 = jax.random.split(key, 5)

    x = jax.random.normal(kx, (B, S, D), dtype=jnp.float32)

    # Deterministic parameter init (uniform, roughly PyTorch-Linear-scaled).
    lim1 = 1.0 / (D ** 0.5)
    w1 = jax.random.uniform(kw1, (H, D), jnp.float32, -lim1, lim1)
    b1 = jax.random.uniform(kb1, (H,), jnp.float32, -lim1, lim1)
    lim2 = 1.0 / ((H * S) ** 0.5)
    w2 = jax.random.uniform(kw2, (O, H * S), jnp.float32, -lim2, lim2)
    b2 = jax.random.uniform(kb2, (O,), jnp.float32, -lim2, lim2)

    forward = make_mlp_forward(w1, b1, w2, b2, sequence_length=S)
    out = jax.block_until_ready(forward(x))

    # Pure-JAX f32 reference (kernel uses bf16 MXU inputs -> loosened tolerance).
    h_ref = jnp.maximum(jnp.einsum("bsd,hd->bsh", x, w1) + b1, 0.0)
    ref = h_ref.reshape(B, S * H) @ w2.T + b2
    assert out.shape == (B, O)
    assert jnp.allclose(out, ref, atol=2e-2, rtol=2e-2), \
        float(jnp.max(jnp.abs(out - ref)))

    print("KERNEL_OK")
</pallas_src>

<mosaic_0001>
module attributes {stable_mosaic.version = 11 : i64} {
  func.func @mlp_kernel(%arg0: i32, %arg1: memref<8x1024xbf16, #tpu.memory_space<vmem>>, %arg2: memref<128x128xbf16, #tpu.memory_space<vmem>>, %arg3: memref<1x128xf32, #tpu.memory_space<vmem>>, %arg4: memref<1024x128xbf16, #tpu.memory_space<vmem>>, %arg5: memref<1x128xf32, #tpu.memory_space<vmem>>, %arg6: memref<8x128xf32, #tpu.memory_space<vmem>>, %arg7: memref<8x1024xbf16, #tpu.memory_space<vmem>>) attributes {dimension_semantics = [#tpu.dimension_semantics<parallel>], iteration_bounds = array<i64: 1>, scalar_prefetch = 0 : i64, scratch_operands = 1 : i64, tpu.core_type = #tpu.core_type<tc>, window_params = [{transform_indices = @transform_0, window_bounds = array<i64: 8, 1024>}, {pipeline_mode = #tpu.pipeline_mode<synchronous>, transform_indices = @transform_1, window_bounds = array<i64: 128, 128>}, {pipeline_mode = #tpu.pipeline_mode<synchronous>, transform_indices = @transform_2, window_bounds = array<i64: 1, 128>}, {pipeline_mode = #tpu.pipeline_mode<synchronous>, transform_indices = @transform_3, window_bounds = array<i64: 1024, 128>}, {pipeline_mode = #tpu.pipeline_mode<synchronous>, transform_indices = @transform_4, window_bounds = array<i64: 1, 128>}, {transform_indices = @transform_5, window_bounds = array<i64: 8, 128>}]} {
    %c0 = arith.constant 0 : index
    %c0_0 = arith.constant 0 : index
    %0 = vector.load %arg1[%c0, %c0_0] : memref<8x1024xbf16, #tpu.memory_space<vmem>>, vector<8x128xbf16>
    %c0_1 = arith.constant 0 : index
    %c0_2 = arith.constant 0 : index
    %1 = vector.load %arg2[%c0_1, %c0_2] : memref<128x128xbf16, #tpu.memory_space<vmem>>, vector<128x128xbf16>
    %cst = arith.constant dense<0.000000e+00> : vector<8x128xf32>
    %2 = tpu.matmul %0, %1, %cst {dimension_numbers = #tpu.dot_dimension_numbers<[1], [0], [0], [1], [0, 0, 1, 1], [], []>} : vector<8x128xbf16>, vector<128x128xbf16>, vector<8x128xf32> -> vector<8x128xf32>
    %c0_3 = arith.constant 0 : index
    %c0_4 = arith.constant 0 : index
    %3 = vector.load %arg3[%c0_3, %c0_4] : memref<1x128xf32, #tpu.memory_space<vmem>>, vector<1x128xf32>
    %4 = vector.broadcast %3 : vector<1x128xf32> to vector<8x128xf32>
    %5 = arith.addf %2, %4 : vector<8x128xf32>
    %cst_5 = arith.constant 0.000000e+00 : f32
    %6 = vector.broadcast %cst_5 : f32 to vector<8x128xf32>
    %7 = arith.maximumf %5, %6 : vector<8x128xf32>
    %8 = arith.truncf %7 : vector<8x128xf32> to vector<8x128xbf16>
    %c0_6 = arith.constant 0 : index
    %c0_7 = arith.constant 0 : index
    %9 = vector.load %arg7[%c0_6, %c0_7] : memref<8x1024xbf16, #tpu.memory_space<vmem>>, vector<8x128xbf16>
    tpu.vector_store %arg7[%c0_6, %c0_7], %8 {strides = array<i32>} : memref<8x1024xbf16, #tpu.memory_space<vmem>>, vector<8x128xbf16>,
    %c0_8 = arith.constant 0 : index
    %c128 = arith.constant 128 : index
    %10 = vector.load %arg1[%c0_8, %c128] : memref<8x1024xbf16, #tpu.memory_space<vmem>>, vector<8x128xbf16>
    %c0_9 = arith.constant 0 : index
    %c0_10 = arith.constant 0 : index
    %11 = vector.load %arg2[%c0_9, %c0_10] : memref<128x128xbf16, #tpu.memory_space<vmem>>, vector<128x128xbf16>
    %cst_11 = arith.constant dense<0.000000e+00> : vector<8x128xf32>
    %12 = tpu.matmul %10, %11, %cst_11 {dimension_numbers = #tpu.dot_dimension_numbers<[1], [0], [0], [1], [0, 0, 1, 1], [], []>} : vector<8x128xbf16>, vector<128x128xbf16>, vector<8x128xf32> -> vector<8x128xf32>
    %c0_12 = arith.constant 0 : index
    %c0_13 = arith.constant 0 : index
    %13 = vector.load %arg3[%c0_12, %c0_13] : memref<1x128xf32, #tpu.memory_space<vmem>>, vector<1x128xf32>
    %14 = vector.broadcast %13 : vector<1x128xf32> to vector<8x128xf32>
    %15 = arith.addf %12, %14 : vector<8x128xf32>
    %cst_14 = arith.constant 0.000000e+00 : f32
    %16 = vector.broadcast %cst_14 : f32 to vector<8x128xf32>
    %17 = arith.maximumf %15, %16 : vector<8x128xf32>
    %18 = arith.truncf %17 : vector<8x128xf32> to vector<8x128xbf16>
    %c0_15 = arith.constant 0 : index
    %c128_16 = arith.constant 128 : index
    %19 = vector.load %arg7[%c0_15, %c128_16] : memref<8x1024xbf16, #tpu.memory_space<vmem>>, vector<8x128xbf16>
    tpu.vector_store %arg7[%c0_15, %c128_16], %18 {strides = array<i32>} : memref<8x1024xbf16, #tpu.memory_space<vmem>>, vector<8x128xbf16>,
    %c0_17 = arith.constant 0 : index
    %c256 = arith.constant 256 : index
    %20 = vector.load %arg1[%c0_17, %c256] : memref<8x1024xbf16, #tpu.memory_space<vmem>>, vector<8x128xbf16>
    %c0_18 = arith.constant 0 : index
    %c0_19 = arith.constant 0 : index
    %21 = vector.load %arg2[%c0_18, %c0_19] : memref<128x128xbf16, #tpu.memory_space<vmem>>, vector<128x128xbf16>
    %cst_20 = arith.constant dense<0.000000e+00> : vector<8x128xf32>
    %22 = tpu.matmul %20, %21, %cst_20 {dimension_numbers = #tpu.dot_dimension_numbers<[1], [0], [0], [1], [0, 0, 1, 1], [], []>} : vector<8x128xbf16>, vector<128x128xbf16>, vector<8x128xf32> -> vector<8x128xf32>
    %c0_21 = arith.constant 0 : index
    %c0_22 = arith.constant 0 : index
    %23 = vector.load %arg3[%c0_21, %c0_22] : memref<1x128xf32, #tpu.memory_space<vmem>>, vector<1x128xf32>
    %24 = vector.broadcast %23 : vector<1x128xf32> to vector<8x128xf32>
    %25 = arith.addf %22, %24 : vector<8x128xf32>
    %cst_23 = arith.constant 0.000000e+00 : f32
    %26 = vector.broadcast %cst_23 : f32 to vector<8x128xf32>
    %27 = arith.maximumf %25, %26 : vector<8x128xf32>
    %28 = arith.truncf %27 : vector<8x128xf32> to vector<8x128xbf16>
    %c0_24 = arith.constant 0 : index
    %c256_25 = arith.constant 256 : index
    %29 = vector.load %arg7[%c0_24, %c256_25] : memref<8x1024xbf16, #tpu.memory_space<vmem>>, vector<8x128xbf16>
    tpu.vector_store %arg7[%c0_24, %c256_25], %28 {strides = array<i32>} : memref<8x1024xbf16, #tpu.memory_space<vmem>>, vector<8x128xbf16>,
    %c0_26 = arith.constant 0 : index
    %c384 = arith.constant 384 : index
    %30 = vector.load %arg1[%c0_26, %c384] : memref<8x1024xbf16, #tpu.memory_space<vmem>>, vector<8x128xbf16>
    %c0_27 = arith.constant 0 : index
    %c0_28 = arith.constant 0 : index
    %31 = vector.load %arg2[%c0_27, %c0_28] : memref<128x128xbf16, #tpu.memory_space<vmem>>, vector<128x128xbf16>
    %cst_29 = arith.constant dense<0.000000e+00> : vector<8x128xf32>
    %32 = tpu.matmul %30, %31, %cst_29 {dimension_numbers = #tpu.dot_dimension_numbers<[1], [0], [0], [1], [0, 0, 1, 1], [], []>} : vector<8x128xbf16>, vector<128x128xbf16>, vector<8x128xf32> -> vector<8x128xf32>
    %c0_30 = arith.constant 0 : index
    %c0_31 = arith.constant 0 : index
    %33 = vector.load %arg3[%c0_30, %c0_31] : memref<1x128xf32, #tpu.memory_space<vmem>>, vector<1x128xf32>
    %34 = vector.broadcast %33 : vector<1x128xf32> to vector<8x128xf32>
    %35 = arith.addf %32, %34 : vector<8x128xf32>
    %cst_32 = arith.constant 0.000000e+00 : f32
    %36 = vector.broadcast %cst_32 : f32 to vector<8x128xf32>
    %37 = arith.maximumf %35, %36 : vector<8x128xf32>
    %38 = arith.truncf %37 : vector<8x128xf32> to vector<8x128xbf16>
    %c0_33 = arith.constant 0 : index
    %c384_34 = arith.constant 384 : index
    %39 = vector.load %arg7[%c0_33, %c384_34] : memref<8x1024xbf16, #tpu.memory_space<vmem>>, vector<8x128xbf16>
    tpu.vector_store %arg7[%c0_33, %c384_34], %38 {strides = array<i32>} : memref<8x1024xbf16, #tpu.memory_space<vmem>>, vector<8x128xbf16>,
    %c0_35 = arith.constant 0 : index
    %c512 = arith.constant 512 : index
    %40 = vector.load %arg1[%c0_35, %c512] : memref<8x1024xbf16, #tpu.memory_space<vmem>>, vector<8x128xbf16>
    %c0_36 = arith.constant 0 : index
    %c0_37 = arith.constant 0 : index
    %41 = vector.load %arg2[%c0_36, %c0_37] : memref<128x128xbf16, #tpu.memory_space<vmem>>, vector<128x128xbf16>
    %cst_38 = arith.constant dense<0.000000e+00> : vector<8x128xf32>
    %42 = tpu.matmul %40, %41, %cst_38 {dimension_numbers = #tpu.dot_dimension_numbers<[1], [0], [0], [1], [0, 0, 1, 1], [], []>} : vector<8x128xbf16>, vector<128x128xbf16>, vector<8x128xf32> -> vector<8x128xf32>
    %c0_39 = arith.constant 0 : index
    %c0_40 = arith.constant 0 : index
    %43 = vector.load %arg3[%c0_39, %c0_40] : memref<1x128xf32, #tpu.memory_space<vmem>>, vector<1x128xf32>
    %44 = vector.broadcast %43 : vector<1x128xf32> to vector<8x128xf32>
    %45 = arith.addf %42, %44 : vector<8x128xf32>
    %cst_41 = arith.constant 0.000000e+00 : f32
    %46 = vector.broadcast %cst_41 : f32 to vector<8x128xf32>
    %47 = arith.maximumf %45, %46 : vector<8x128xf32>
    %48 = arith.truncf %47 : vector<8x128xf32> to vector<8x128xbf16>
    %c0_42 = arith.constant 0 : index
    %c512_43 = arith.constant 512 : index
    %49 = vector.load %arg7[%c0_42, %c512_43] : memref<8x1024xbf16, #tpu.memory_space<vmem>>, vector<8x128xbf16>
    tpu.vector_store %arg7[%c0_42, %c512_43], %48 {strides = array<i32>} : memref<8x1024xbf16, #tpu.memory_space<vmem>>, vector<8x128xbf16>,
    %c0_44 = arith.constant 0 : index
    %c640 = arith.constant 640 : index
    %50 = vector.load %arg1[%c0_44, %c640] : memref<8x1024xbf16, #tpu.memory_space<vmem>>, vector<8x128xbf16>
    %c0_45 = arith.constant 0 : index
    %c0_46 = arith.constant 0 : index
    %51 = vector.load %arg2[%c0_45, %c0_46] : memref<128x128xbf16, #tpu.memory_space<vmem>>, vector<128x128xbf16>
    %cst_47 = arith.constant dense<0.000000e+00> : vector<8x128xf32>
    %52 = tpu.matmul %50, %51, %cst_47 {dimension_numbers = #tpu.dot_dimension_numbers<[1], [0], [0], [1], [0, 0, 1, 1], [], []>} : vector<8x128xbf16>, vector<128x128xbf16>, vector<8x128xf32> -> vector<8x128xf32>
    %c0_48 = arith.constant 0 : index
    %c0_49 = arith.constant 0 : index
    %53 = vector.load %arg3[%c0_48, %c0_49] : memref<1x128xf32, #tpu.memory_space<vmem>>, vector<1x128xf32>
    %54 = vector.broadcast %53 : vector<1x128xf32> to vector<8x128xf32>
    %55 = arith.addf %52, %54 : vector<8x128xf32>
    %cst_50 = arith.constant 0.000000e+00 : f32
    %56 = vector.broadcast %cst_50 : f32 to vector<8x128xf32>
    %57 = arith.maximumf %55, %56 : vector<8x128xf32>
    %58 = arith.truncf %57 : vector<8x128xf32> to vector<8x128xbf16>
    %c0_51 = arith.constant 0 : index
    %c640_52 = arith.constant 640 : index
    %59 = vector.load %arg7[%c0_51, %c640_52] : memref<8x1024xbf16, #tpu.memory_space<vmem>>, vector<8x128xbf16>
    tpu.vector_store %arg7[%c0_51, %c640_52], %58 {strides = array<i32>} : memref<8x1024xbf16, #tpu.memory_space<vmem>>, vector<8x128xbf16>,
    %c0_53 = arith.constant 0 : index
    %c768 = arith.constant 768 : index
    %60 = vector.load %arg1[%c0_53, %c768] : memref<8x1024xbf16, #tpu.memory_space<vmem>>, vector<8x128xbf16>
    %c0_54 = arith.constant 0 : index
    %c0_55 = arith.constant 0 : index
    %61 = vector.load %arg2[%c0_54, %c0_55] : memref<128x128xbf16, #tpu.memory_space<vmem>>, vector<128x128xbf16>
    %cst_56 = arith.constant dense<0.000000e+00> : vector<8x128xf32>
    %62 = tpu.matmul %60, %61, %cst_56 {dimension_numbers = #tpu.dot_dimension_numbers<[1], [0], [0], [1], [0, 0, 1, 1], [], []>} : vector<8x128xbf16>, vector<128x128xbf16>, vector<8x128xf32> -> vector<8x128xf32>
    %c0_57 = arith.constant 0 : index
    %c0_58 = arith.constant 0 : index
    %63 = vector.load %arg3[%c0_57, %c0_58] : memref<1x128xf32, #tpu.memory_space<vmem>>, vector<1x128xf32>
    %64 = vector.broadcast %63 : vector<1x128xf32> to vector<8x128xf32>
    %65 = arith.addf %62, %64 : vector<8x128xf32>
    %cst_59 = arith.constant 0.000000e+00 : f32
    %66 = vector.broadcast %cst_59 : f32 to vector<8x128xf32>
    %67 = arith.maximumf %65, %66 : vector<8x128xf32>
    %68 = arith.truncf %67 : vector<8x128xf32> to vector<8x128xbf16>
    %c0_60 = arith.constant 0 : index
    %c768_61 = arith.constant 768 : index
    %69 = vector.load %arg7[%c0_60, %c768_61] : memref<8x1024xbf16, #tpu.memory_space<vmem>>, vector<8x128xbf16>
    tpu.vector_store %arg7[%c0_60, %c768_61], %68 {strides = array<i32>} : memref<8x1024xbf16, #tpu.memory_space<vmem>>, vector<8x128xbf16>,
    %c0_62 = arith.constant 0 : index
    %c896 = arith.constant 896 : index
    %70 = vector.load %arg1[%c0_62, %c896] : memref<8x1024xbf16, #tpu.memory_space<vmem>>, vector<8x128xbf16>
    %c0_63 = arith.constant 0 : index
    %c0_64 = arith.constant 0 : index
    %71 = vector.load %arg2[%c0_63, %c0_64] : memref<128x128xbf16, #tpu.memory_space<vmem>>, vector<128x128xbf16>
    %cst_65 = arith.constant dense<0.000000e+00> : vector<8x128xf32>
    %72 = tpu.matmul %70, %71, %cst_65 {dimension_numbers = #tpu.dot_dimension_numbers<[1], [0], [0], [1], [0, 0, 1, 1], [], []>} : vector<8x128xbf16>, vector<128x128xbf16>, vector<8x128xf32> -> vector<8x128xf32>
    %c0_66 = arith.constant 0 : index
    %c0_67 = arith.constant 0 : index
    %73 = vector.load %arg3[%c0_66, %c0_67] : memref<1x128xf32, #tpu.memory_space<vmem>>, vector<1x128xf32>
    %74 = vector.broadcast %73 : vector<1x128xf32> to vector<8x128xf32>
    %75 = arith.addf %72, %74 : vector<8x128xf32>
    %cst_68 = arith.constant 0.000000e+00 : f32
    %76 = vector.broadcast %cst_68 : f32 to vector<8x128xf32>
    %77 = arith.maximumf %75, %76 : vector<8x128xf32>
    %78 = arith.truncf %77 : vector<8x128xf32> to vector<8x128xbf16>
    %c0_69 = arith.constant 0 : index
    %c896_70 = arith.constant 896 : index
    %79 = vector.load %arg7[%c0_69, %c896_70] : memref<8x1024xbf16, #tpu.memory_space<vmem>>, vector<8x128xbf16>
    tpu.vector_store %arg7[%c0_69, %c896_70], %78 {strides = array<i32>} : memref<8x1024xbf16, #tpu.memory_space<vmem>>, vector<8x128xbf16>,
    %c0_71 = arith.constant 0 : index
    %c0_72 = arith.constant 0 : index
    %80 = vector.load %arg7[%c0_71, %c0_72] : memref<8x1024xbf16, #tpu.memory_space<vmem>>, vector<8x1024xbf16>
    %c0_73 = arith.constant 0 : index
    %c0_74 = arith.constant 0 : index
    %81 = vector.load %arg4[%c0_73, %c0_74] : memref<1024x128xbf16, #tpu.memory_space<vmem>>, vector<1024x128xbf16>
    %cst_75 = arith.constant dense<0.000000e+00> : vector<8x128xf32>
    %82 = tpu.matmul %80, %81, %cst_75 {dimension_numbers = #tpu.dot_dimension_numbers<[1], [0], [0], [1], [0, 0, 1, 1], [], []>} : vector<8x1024xbf16>, vector<1024x128xbf16>, vector<8x128xf32> -> vector<8x128xf32>
    %c0_76 = arith.constant 0 : index
    %c0_77 = arith.constant 0 : index
    %83 = vector.load %arg5[%c0_76, %c0_77] : memref<1x128xf32, #tpu.memory_space<vmem>>, vector<1x128xf32>
    %84 = vector.broadcast %83 : vector<1x128xf32> to vector<8x128xf32>
    %85 = arith.addf %82, %84 : vector<8x128xf32>
    %c0_78 = arith.constant 0 : index
    %c0_79 = arith.constant 0 : index
    %86 = vector.load %arg6[%c0_78, %c0_79] : memref<8x128xf32, #tpu.memory_space<vmem>>, vector<8x128xf32>
    tpu.vector_store %arg6[%c0_78, %c0_79], %85 {strides = array<i32>} : memref<8x128xf32, #tpu.memory_space<vmem>>, vector<8x128xf32>,
    return
  }
  func.func @transform_0(%arg0: i32) -> (i32, i32) {
    %c0_i32 = arith.constant 0 : i32
    %c0_i32_0 = arith.constant 0 : i32
    return %arg0, %c0_i32 : i32, i32
  }
  func.func @transform_1(%arg0: i32) -> (i32, i32) {
    %c0_i32 = arith.constant 0 : i32
    %c0_i32_0 = arith.constant 0 : i32
    %c0_i32_1 = arith.constant 0 : i32
    return %c0_i32, %c0_i32_0 : i32, i32
  }
  func.func @transform_2(%arg0: i32) -> (i32, i32) {
    %c0_i32 = arith.constant 0 : i32
    %c0_i32_0 = arith.constant 0 : i32
    %c0_i32_1 = arith.constant 0 : i32
    return %c0_i32, %c0_i32_0 : i32, i32
  }
  func.func @transform_3(%arg0: i32) -> (i32, i32) {
    %c0_i32 = arith.constant 0 : i32
    %c0_i32_0 = arith.constant 0 : i32
    %c0_i32_1 = arith.constant 0 : i32
    return %c0_i32, %c0_i32_0 : i32, i32
  }
  func.func @transform_4(%arg0: i32) -> (i32, i32) {
    %c0_i32 = arith.constant 0 : i32
    %c0_i32_0 = arith.constant 0 : i32
    %c0_i32_1 = arith.constant 0 : i32
    return %c0_i32, %c0_i32_0 : i32, i32
  }
  func.func @transform_5(%arg0: i32) -> (i32, i32) {
    %c0_i32 = arith.constant 0 : i32
    %c0_i32_0 = arith.constant 0 : i32
    return %arg0, %c0_i32 : i32, i32
  }
}

</mosaic_0001>

<llo_original>
// kernel: forward.1
$region0: #{forward.1}
  #allocation0 [shape = 'u32[]', space=smem, size = 0x4, offset = 0x4, fixed_abs, tag = 'smem constant byte address 0x4 - core index']
  #allocation1 [shape = 'u32[72,128]{1,0:T(1,128)}', space=vmem, size = 0x9000, scoped, tag = 'internal scratch']
  #allocation2 [shape = 'bf16[8,1024]{1,0:T(8,128)(2,1)}', space=vmem, size = 0x4000, scoped, tag = 'scratch operand']
  %s0 = inlined_call_operand.vmem [shape: bf16[8,1024], index: 0, kind: input, shape index: {}]
  %s1 = inlined_call_operand.vmem [shape: bf16[128,128], index: 1, kind: input, shape index: {}]
  %s2 = inlined_call_operand.vmem [shape: f32[1,128], index: 2, kind: input, shape index: {}]
  %s3 = inlined_call_operand.hbm [shape: bf16[1024,128], index: 3, kind: input, shape index: {}]
  %s4 = inlined_call_operand.vmem [shape: f32[1,128], index: 4, kind: input, shape index: {}]
  %s5 = inlined_call_operand.vmem [shape: f32[8,128], index: 5, kind: output, shape index: {}]
  %s6 = sld [smem:[#allocation0]]
  $region34: #{forward.1} parent=0
    _
  %s8 = ssub.s32 1, %s6
  %s9 = scalar_select 0, %s8, %s6
  $region1: #{forward.1} parent=0
    #allocation3 [shape = 'u8[262144]{0}', space=vmem, size = 0x40000, scoped, tag = 'input window, operand 3, single buffered']
    #allocation4 [shape = 's32[1]{0}', space=sflag, size = 0x4, scoped, tag = 'scoped memory for forward.1']
    %10 = vsyncpa [#allocation4], 0
    // Predicated region
    $region2: #{forward.1} parent=1 // pred_check
      _
    $region3: #{forward.1} parent=1 // pred_check_branch
      %12 = sbr.rel (0) target = $region5
    $region4: #{forward.1} parent=1 // pred_region
      _
    $region5: #{forward.1} parent=1 // pred_fallthru
      _
    // Predicated region
    $region6: #{forward.1} parent=1 // pred_check
      _
    $region7: #{forward.1} parent=1 // pred_check_branch
      %14 = sbr.rel (0) target = $region9
    $region8: #{forward.1} parent=1 // pred_region
      _
    $region9: #{forward.1} parent=1 // pred_fallthru
      _
    // Predicated region
    $region10: #{forward.1} parent=1 // pred_check
      _
    $region11: #{forward.1} parent=1 // pred_check_branch
      %16 = sbr.rel (0) target = $region13
    $region12: #{forward.1} parent=1 // pred_region
      _
    $region13: #{forward.1} parent=1 // pred_fallthru
      _
    // Predicated region
    $region14: #{forward.1} parent=1 // pred_check
      _
    $region15: #{forward.1} parent=1 // pred_check_branch
      %18 = sbr.rel (0) target = $region17
    $region16: #{forward.1} parent=1 // pred_region
      %20 = vsyncadd [#allocation4], 0
      %s21 = sshll.u32 %s3, 4
      %s22 = int_to_ptr.hbm [resolvable:$true] %s21
      %s23 = sshll.u32 [#allocation3], 4
      %s24 = int_to_ptr.vmem [resolvable:$true] %s23
      %29 = dma.hbm_to_vmem [thread:$0]  %s22, 8192, %s24, [#allocation4], 64, 64, 4
    $region17: #{forward.1} parent=1 // pred_fallthru
      _
    // Predicated region
    $region18: #{forward.1} parent=1 // pred_check
      _
    $region19: #{forward.1} parent=1 // pred_check_branch
      %31 = sbr.rel (0) target = $region21
    $region20: #{forward.1} parent=1 // pred_region
      _
    $region21: #{forward.1} parent=1 // pred_fallthru
      _
    // Predicated region
    $region22: #{forward.1} parent=1 // pred_check
      _
    $region23: #{forward.1} parent=1 // pred_check_branch
      %33 = sbr.rel (0) target = $region25
    $region24: #{forward.1} parent=1 // pred_region
      %35 = dma.done [#allocation4], 8192
    $region25: #{forward.1} parent=1 // pred_fallthru
      _
    %v36 = vld [vmem:[%s0] sm:$0xf]
    %v37 = vld [vmem:[%s1] sm:$0xf]
    %v38 = vld [vmem:[%s1 + $0x4] sm:$0xf]
    %v39 = vld [vmem:[%s1 + $0x8] sm:$0xf]
    %v40 = vld [vmem:[%s1 + $0xc] sm:$0xf]
    %v41 = vld [vmem:[%s1 + $0x10] sm:$0xf]
    %v42 = vld [vmem:[%s1 + $0x14] sm:$0xf]
    %v43 = vld [vmem:[%s1 + $0x18] sm:$0xf]
    %v44 = vld [vmem:[%s1 + $0x1c] sm:$0xf]
    %v45 = vld [vmem:[%s1 + $0x20] sm:$0xf]
    %v46 = vld [vmem:[%s1 + $0x24] sm:$0xf]
    %v47 = vld [vmem:[%s1 + $0x28] sm:$0xf]
    %v48 = vld [vmem:[%s1 + $0x2c] sm:$0xf]
    %v49 = vld [vmem:[%s1 + $0x30] sm:$0xf]
    %v50 = vld [vmem:[%s1 + $0x34] sm:$0xf]
    %v51 = vld [vmem:[%s1 + $0x38] sm:$0xf]
    %v52 = vld [vmem:[%s1 + $0x3c] sm:$0xf]
    %v53 = vld [vmem:[%s2] sm:$0x1]
    %v55 = vperm.slane %v53, 0
    %v73 = vunpack.c.l.b16 %v37
    %v74 = vunpack.c.l.b16 %v38
    %v75 = vunpack.c.l.b16 %v39
    %v76 = vunpack.c.l.b16 %v40
    %v77 = vunpack.c.l.b16 %v41
    %v78 = vunpack.c.l.b16 %v42
    %v79 = vunpack.c.l.b16 %v43
    %v80 = vunpack.c.l.b16 %v44
    %v81 = vunpack.c.l.b16 %v45
    %v82 = vunpack.c.l.b16 %v46
    %v83 = vunpack.c.l.b16 %v47
    %v84 = vunpack.c.l.b16 %v48
    %v85 = vunpack.c.l.b16 %v49
    %v86 = vunpack.c.l.b16 %v50
    %v87 = vunpack.c.l.b16 %v51
    %v88 = vunpack.c.l.b16 %v52
    %v89 = vpack.c.b16 %v74, %v73
    %v90 = vpack.c.b16 %v76, %v75
    %v91 = vpack.c.b16 %v78, %v77
    %v92 = vpack.c.b16 %v80, %v79
    %v93 = vpack.c.b16 %v82, %v81
    %v94 = vpack.c.b16 %v84, %v83
    %v95 = vpack.c.b16 %v86, %v85
    %v96 = vpack.c.b16 %v88, %v87
    %105 = vmatpush.bf16.msra.mxu0 %v96
    %106 = vmatpush.bf16.msra.mxu0 %v95
    %107 = vmatpush.bf16.msra.mxu0 %v94
    %108 = vmatpush.bf16.msra.mxu0 %v93
    %109 = vmatpush.bf16.msra.mxu0 %v92
    %110 = vmatpush.bf16.msra.mxu0 %v91
    %111 = vmatpush.bf16.msra.mxu0 %v90
    %112 = vmatpush.bf16.msra.mxu0 %v89
    %113 = vmatmul.bf16.gmra.mxu0 %v36
    %v114 = vpop.f32.mrf.mxu0
    %v115 = vadd.f32 %v55, %v114
    %v116 = vpop.f32.mrf.mxu0
    %117 = vdwg.mxu0
    %v118 = vmax.f32 %v115, 0.0
    %v119 = vpack.c.bf16 %v118, %v118
    %120 = vst [vmem:[#allocation2] sm:$0xf] %v119
    %v121 = vld [vmem:[%s0 + $0x4] sm:$0xf]
    %v122 = vld [vmem:[%s1] sm:$0xf]
    %v123 = vld [vmem:[%s1 + $0x4] sm:$0xf]
    %v124 = vld [vmem:[%s1 + $0x8] sm:$0xf]
    %v125 = vld [vmem:[%s1 + $0xc] sm:$0xf]
    %v126 = vld [vmem:[%s1 + $0x10] sm:$0xf]
    %v127 = vld [vmem:[%s1 + $0x14] sm:$0xf]
    %v128 = vld [vmem:[%s1 + $0x18] sm:$0xf]
    %v129 = vld [vmem:[%s1 + $0x1c] sm:$0xf]
    %v130 = vld [vmem:[%s1 + $0x20] sm:$0xf]
    %v131 = vld [vmem:[%s1 + $0x24] sm:$0xf]
    %v132 = vld [vmem:[%s1 + $0x28] sm:$0xf]
    %v133 = vld [vmem:[%s1 + $0x2c] sm:$0xf]
    %v134 = vld [vmem:[%s1 + $0x30] sm:$0xf]
    %v135 = vld [vmem:[%s1 + $0x34] sm:$0xf]
    %v136 = vld [vmem:[%s1 + $0x38] sm:$0xf]
    %v137 = vld [vmem:[%s1 + $0x3c] sm:$0xf]
    %v138 = vld [vmem:[%s2] sm:$0x1]
    %v140 = vperm.slane %v138, 0
    %v158 = vunpack.c.l.b16 %v122
    %v159 = vunpack.c.l.b16 %v123
    %v160 = vunpack.c.l.b16 %v124
    %v161 = vunpack.c.l.b16 %v125
    %v162 = vunpack.c.l.b16 %v126
    %v163 = vunpack.c.l.b16 %v127
    %v164 = vunpack.c.l.b16 %v128
    %v165 = vunpack.c.l.b16 %v129
    %v166 = vunpack.c.l.b16 %v130
    %v167 = vunpack.c.l.b16 %v131
    %v168 = vunpack.c.l.b16 %v132
    %v169 = vunpack.c.l.b16 %v133
    %v170 = vunpack.c.l.b16 %v134
    %v171 = vunpack.c.l.b16 %v135
    %v172 = vunpack.c.l.b16 %v136
    %v173 = vunpack.c.l.b16 %v137
    %v174 = vpack.c.b16 %v159, %v158
    %v175 = vpack.c.b16 %v161, %v160
    %v176 = vpack.c.b16 %v163, %v162
    %v177 = vpack.c.b16 %v165, %v164
    %v178 = vpack.c.b16 %v167, %v166
    %v179 = vpack.c.b16 %v169, %v168
    %v180 = vpack.c.b16 %v171, %v170
    %v181 = vpack.c.b16 %v173, %v172
    %190 = vmatpush.bf16.msra.mxu0 %v181
    %191 = vmatpush.bf16.msra.mxu0 %v180
    %192 = vmatpush.bf16.msra.mxu0 %v179
    %193 = vmatpush.bf16.msra.mxu0 %v178
    %194 = vmatpush.bf16.msra.mxu0 %v177
    %195 = vmatpush.bf16.msra.mxu0 %v176
    %196 = vmatpush.bf16.msra.mxu0 %v175
    %197 = vmatpush.bf16.msra.mxu0 %v174
    %198 = vmatmul.bf16.gmra.mxu0 %v121
    %v199 = vpop.f32.mrf.mxu0
    %v200 = vadd.f32 %v140, %v199
    %v201 = vpop.f32.mrf.mxu0
    %202 = vdwg.mxu0
    %v203 = vmax.f32 %v200, 0.0
    %v204 = vpack.c.bf16 %v203, %v203
    %205 = vst [vmem:[#allocation2 + $0x4] sm:$0xf] %v204
    %v206 = vld [vmem:[%s0 + $0x8] sm:$0xf]
    %v207 = vld [vmem:[%s1] sm:$0xf]
    %v208 = vld [vmem:[%s1 + $0x4] sm:$0xf]
    %v209 = vld [vmem:[%s1 + $0x8] sm:$0xf]
    %v210 = vld [vmem:[%s1 + $0xc] sm:$0xf]
    %v211 = vld [vmem:[%s1 + $0x10] sm:$0xf]
    %v212 = vld [vmem:[%s1 + $0x14] sm:$0xf]
    %v213 = vld [vmem:[%s1 + $0x18] sm:$0xf]
    %v214 = vld [vmem:[%s1 + $0x1c] sm:$0xf]
    %v215 = vld [vmem:[%s1 + $0x20] sm:$0xf]
    %v216 = vld [vmem:[%s1 + $0x24] sm:$0xf]
    %v217 = vld [vmem:[%s1 + $0x28] sm:$0xf]
    %v218 = vld [vmem:[%s1 + $0x2c] sm:$0xf]
    %v219 = vld [vmem:[%s1 + $0x30] sm:$0xf]
    %v220 = vld [vmem:[%s1 + $0x34] sm:$0xf]
    %v221 = vld [vmem:[%s1 + $0x38] sm:$0xf]
    %v222 = vld [vmem:[%s1 + $0x3c] sm:$0xf]
    %v223 = vld [vmem:[%s2] sm:$0x1]
    %v225 = vperm.slane %v223, 0
    %v243 = vunpack.c.l.b16 %v207
    %v244 = vunpack.c.l.b16 %v208
    %v245 = vunpack.c.l.b16 %v209
    %v246 = vunpack.c.l.b16 %v210
    %v247 = vunpack.c.l.b16 %v211
    %v248 = vunpack.c.l.b16 %v212
    %v249 = vunpack.c.l.b16 %v213
    %v250 = vunpack.c.l.b16 %v214
    %v251 = vunpack.c.l.b16 %v215
    %v252 = vunpack.c.l.b16 %v216
    %v253 = vunpack.c.l.b16 %v217
    %v254 = vunpack.c.l.b16 %v218
    %v255 = vunpack.c.l.b16 %v219
    %v256 = vunpack.c.l.b16 %v220
    %v257 = vunpack.c.l.b16 %v221
    %v258 = vunpack.c.l.b16 %v222
    %v259 = vpack.c.b16 %v244, %v243
    %v260 = vpack.c.b16 %v246, %v245
    %v261 = vpack.c.b16 %v248, %v247
    %v262 = vpack.c.b16 %v250, %v249
    %v263 = vpack.c.b16 %v252, %v251
    %v264 = vpack.c.b16 %v254, %v253
    %v265 = vpack.c.b16 %v256, %v255
    %v266 = vpack.c.b16 %v258, %v257
    %275 = vmatpush.bf16.msra.mxu0 %v266
    %276 = vmatpush.bf16.msra.mxu0 %v265
    %277 = vmatpush.bf16.msra.mxu0 %v264
    %278 = vmatpush.bf16.msra.mxu0 %v263
    %279 = vmatpush.bf16.msra.mxu0 %v262
    %280 = vmatpush.bf16.msra.mxu0 %v261
    %281 = vmatpush.bf16.msra.mxu0 %v260
    %282 = vmatpush.bf16.msra.mxu0 %v259
    %283 = vmatmul.bf16.gmra.mxu0 %v206
    %v284 = vpop.f32.mrf.mxu0
    %v285 = vadd.f32 %v225, %v284
    %v286 = vpop.f32.mrf.mxu0
    %287 = vdwg.mxu0
    %v288 = vmax.f32 %v285, 0.0
    %v289 = vpack.c.bf16 %v288, %v288
    %290 = vst [vmem:[#allocation2 + $0x8] sm:$0xf] %v289
    %v291 = vld [vmem:[%s0 + $0xc] sm:$0xf]
    %v292 = vld [vmem:[%s1] sm:$0xf]
    %v293 = vld [vmem:[%s1 + $0x4] sm:$0xf]
    %v294 = vld [vmem:[%s1 + $0x8] sm:$0xf]
    %v295 = vld [vmem:[%s1 + $0xc] sm:$0xf]
    %v296 = vld [vmem:[%s1 + $0x10] sm:$0xf]
    %v297 = vld [vmem:[%s1 + $0x14] sm:$0xf]
    %v298 = vld [vmem:[%s1 + $0x18] sm:$0xf]
    %v299 = vld [vmem:[%s1 + $0x1c] sm:$0xf]
    %v300 = vld [vmem:[%s1 + $0x20] sm:$0xf]
    %v301 = vld [vmem:[%s1 + $0x24] sm:$0xf]
    %v302 = vld [vmem:[%s1 + $0x28] sm:$0xf]
    %v303 = vld [vmem:[%s1 + $0x2c] sm:$0xf]
    %v304 = vld [vmem:[%s1 + $0x30] sm:$0xf]
    %v305 = vld [vmem:[%s1 + $0x34] sm:$0xf]
    %v306 = vld [vmem:[%s1 + $0x38] sm:$0xf]
    %v307 = vld [vmem:[%s1 + $0x3c] sm:$0xf]
    %v308 = vld [vmem:[%s2] sm:$0x1]
    %v310 = vperm.slane %v308, 0
    %v328 = vunpack.c.l.b16 %v292
    %v329 = vunpack.c.l.b16 %v293
    %v330 = vunpack.c.l.b16 %v294
    %v331 = vunpack.c.l.b16 %v295
    %v332 = vunpack.c.l.b16 %v296
    %v333 = vunpack.c.l.b16 %v297
    %v334 = vunpack.c.l.b16 %v298
    %v335 = vunpack.c.l.b16 %v299
    %v336 = vunpack.c.l.b16 %v300
    %v337 = vunpack.c.l.b16 %v301
    %v338 = vunpack.c.l.b16 %v302
    %v339 = vunpack.c.l.b16 %v303
    %v340 = vunpack.c.l.b16 %v304
    %v341 = vunpack.c.l.b16 %v305
    %v342 = vunpack.c.l.b16 %v306
    %v343 = vunpack.c.l.b16 %v307
    %v344 = vpack.c.b16 %v329, %v328
    %v345 = vpack.c.b16 %v331, %v330
    %v346 = vpack.c.b16 %v333, %v332
    %v347 = vpack.c.b16 %v335, %v334
    %v348 = vpack.c.b16 %v337, %v336
    %v349 = vpack.c.b16 %v339, %v338
    %v350 = vpack.c.b16 %v341, %v340
    %v351 = vpack.c.b16 %v343, %v342
    %360 = vmatpush.bf16.msra.mxu0 %v351
    %361 = vmatpush.bf16.msra.mxu0 %v350
    %362 = vmatpush.bf16.msra.mxu0 %v349
    %363 = vmatpush.bf16.msra.mxu0 %v348
    %364 = vmatpush.bf16.msra.mxu0 %v347
    %365 = vmatpush.bf16.msra.mxu0 %v346
    %366 = vmatpush.bf16.msra.mxu0 %v345
    %367 = vmatpush.bf16.msra.mxu0 %v344
    %368 = vmatmul.bf16.gmra.mxu0 %v291
    %v369 = vpop.f32.mrf.mxu0
    %v370 = vadd.f32 %v310, %v369
    %v371 = vpop.f32.mrf.mxu0
    %372 = vdwg.mxu0
    %v373 = vmax.f32 %v370, 0.0
    %v374 = vpack.c.bf16 %v373, %v373
    %375 = vst [vmem:[#allocation2 + $0xc] sm:$0xf] %v374
    %v376 = vld [vmem:[%s0 + $0x10] sm:$0xf]
    %v377 = vld [vmem:[%s1] sm:$0xf]
    %v378 = vld [vmem:[%s1 + $0x4] sm:$0xf]
    %v379 = vld [vmem:[%s1 + $0x8] sm:$0xf]
    %v380 = vld [vmem:[%s1 + $0xc] sm:$0xf]
    %v381 = vld [vmem:[%s1 + $0x10] sm:$0xf]
    %v382 = vld [vmem:[%s1 + $0x14] sm:$0xf]
    %v383 = vld [vmem:[%s1 + $0x18] sm:$0xf]
    %v384 = vld [vmem:[%s1 + $0x1c] sm:$0xf]
    %v385 = vld [vmem:[%s1 + $0x20] sm:$0xf]
    %v386 = vld [vmem:[%s1 + $0x24] sm:$0xf]
    %v387 = vld [vmem:[%s1 + $0x28] sm:$0xf]
    %v388 = vld [vmem:[%s1 + $0x2c] sm:$0xf]
    %v389 = vld [vmem:[%s1 + $0x30] sm:$0xf]
    %v390 = vld [vmem:[%s1 + $0x34] sm:$0xf]
    %v391 = vld [vmem:[%s1 + $0x38] sm:$0xf]
    %v392 = vld [vmem:[%s1 + $0x3c] sm:$0xf]
    %v393 = vld [vmem:[%s2] sm:$0x1]
    %v395 = vperm.slane %v393, 0
    %v413 = vunpack.c.l.b16 %v377
    %v414 = vunpack.c.l.b16 %v378
    %v415 = vunpack.c.l.b16 %v379
    %v416 = vunpack.c.l.b16 %v380
    %v417 = vunpack.c.l.b16 %v381
    %v418 = vunpack.c.l.b16 %v382
    %v419 = vunpack.c.l.b16 %v383
    %v420 = vunpack.c.l.b16 %v384
    %v421 = vunpack.c.l.b16 %v385
    %v422 = vunpack.c.l.b16 %v386
    %v423 = vunpack.c.l.b16 %v387
    %v424 = vunpack.c.l.b16 %v388
    %v425 = vunpack.c.l.b16 %v389
    %v426 = vunpack.c.l.b16 %v390
    %v427 = vunpack.c.l.b16 %v391
    %v428 = vunpack.c.l.b16 %v392
    %v429 = vpack.c.b16 %v414, %v413
    %v430 = vpack.c.b16 %v416, %v415
    %v431 = vpack.c.b16 %v418, %v417
    %v432 = vpack.c.b16 %v420, %v419
    %v433 = vpack.c.b16 %v422, %v421
    %v434 = vpack.c.b16 %v424, %v423
    %v435 = vpack.c.b16 %v426, %v425
    %v436 = vpack.c.b16 %v428, %v427
    %445 = vmatpush.bf16.msra.mxu0 %v436
    %446 = vmatpush.bf16.msra.mxu0 %v435
    %447 = vmatpush.bf16.msra.mxu0 %v434
    %448 = vmatpush.bf16.msra.mxu0 %v433
    %449 = vmatpush.bf16.msra.mxu0 %v432
    %450 = vmatpush.bf16.msra.mxu0 %v431
    %451 = vmatpush.bf16.msra.mxu0 %v430
    %452 = vmatpush.bf16.msra.mxu0 %v429
    %453 = vmatmul.bf16.gmra.mxu0 %v376
    %v454 = vpop.f32.mrf.mxu0
    %v455 = vadd.f32 %v395, %v454
    %v456 = vpop.f32.mrf.mxu0
    %457 = vdwg.mxu0
    %v458 = vmax.f32 %v455, 0.0
    %v459 = vpack.c.bf16 %v458, %v458
    %460 = vst [vmem:[#allocation2 + $0x10] sm:$0xf] %v459
    %v461 = vld [vmem:[%s0 + $0x14] sm:$0xf]
    %v462 = vld [vmem:[%s1] sm:$0xf]
    %v463 = vld [vmem:[%s1 + $0x4] sm:$0xf]
    %v464 = vld [vmem:[%s1 + $0x8] sm:$0xf]
    %v465 = vld [vmem:[%s1 + $0xc] sm:$0xf]
    %v466 = vld [vmem:[%s1 + $0x10] sm:$0xf]
    %v467 = vld [vmem:[%s1 + $0x14] sm:$0xf]
    %v468 = vld [vmem:[%s1 + $0x18] sm:$0xf]
    %v469 = vld [vmem:[%s1 + $0x1c] sm:$0xf]
    %v470 = vld [vmem:[%s1 + $0x20] sm:$0xf]
    %v471 = vld [vmem:[%s1 + $0x24] sm:$0xf]
    %v472 = vld [vmem:[%s1 + $0x28] sm:$0xf]
    %v473 = vld [vmem:[%s1 + $0x2c] sm:$0xf]
    %v474 = vld [vmem:[%s1 + $0x30] sm:$0xf]
    %v475 = vld [vmem:[%s1 + $0x34] sm:$0xf]
    %v476 = vld [vmem:[%s1 + $0x38] sm:$0xf]
    %v477 = vld [vmem:[%s1 + $0x3c] sm:$0xf]
    %v478 = vld [vmem:[%s2] sm:$0x1]
    %v480 = vperm.slane %v478, 0
    %v498 = vunpack.c.l.b16 %v462
    %v499 = vunpack.c.l.b16 %v463
    %v500 = vunpack.c.l.b16 %v464
    %v501 = vunpack.c.l.b16 %v465
    %v502 = vunpack.c.l.b16 %v466
    %v503 = vunpack.c.l.b16 %v467
    %v504 = vunpack.c.l.b16 %v468
    %v505 = vunpack.c.l.b16 %v469
    %v506 = vunpack.c.l.b16 %v470
    %v507 = vunpack.c.l.b16 %v471
    %v508 = vunpack.c.l.b16 %v472
    %v509 = vunpack.c.l.b16 %v473
    %v510 = vunpack.c.l.b16 %v474
    %v511 = vunpack.c.l.b16 %v475
    %v512 = vunpack.c.l.b16 %v476
    %v513 = vunpack.c.l.b16 %v477
    %v514 = vpack.c.b16 %v499, %v498
    %v515 = vpack.c.b16 %v501, %v500
    %v516 = vpack.c.b16 %v503, %v502
    %v517 = vpack.c.b16 %v505, %v504
    %v518 = vpack.c.b16 %v507, %v506
    %v519 = vpack.c.b16 %v509, %v508
    %v520 = vpack.c.b16 %v511, %v510
    %v521 = vpack.c.b16 %v513, %v512
    %530 = vmatpush.bf16.msra.mxu0 %v521
    %531 = vmatpush.bf16.msra.mxu0 %v520
    %532 = vmatpush.bf16.msra.mxu0 %v519
    %533 = vmatpush.bf16.msra.mxu0 %v518
    %534 = vmatpush.bf16.msra.mxu0 %v517
    %535 = vmatpush.bf16.msra.mxu0 %v516
    %536 = vmatpush.bf16.msra.mxu0 %v515
    %537 = vmatpush.bf16.msra.mxu0 %v514
    %538 = vmatmul.bf16.gmra.mxu0 %v461
    %v539 = vpop.f32.mrf.mxu0
    %v540 = vadd.f32 %v480, %v539
    %v541 = vpop.f32.mrf.mxu0
    %542 = vdwg.mxu0
    %v543 = vmax.f32 %v540, 0.0
    %v544 = vpack.c.bf16 %v543, %v543
    %545 = vst [vmem:[#allocation2 + $0x14] sm:$0xf] %v544
    %v546 = vld [vmem:[%s0 + $0x18] sm:$0xf]
    %v547 = vld [vmem:[%s1] sm:$0xf]
    %v548 = vld [vmem:[%s1 + $0x4] sm:$0xf]
    %v549 = vld [vmem:[%s1 + $0x8] sm:$0xf]
    %v550 = vld [vmem:[%s1 + $0xc] sm:$0xf]
    %v551 = vld [vmem:[%s1 + $0x10] sm:$0xf]
    %v552 = vld [vmem:[%s1 + $0x14] sm:$0xf]
    %v553 = vld [vmem:[%s1 + $0x18] sm:$0xf]
    %v554 = vld [vmem:[%s1 + $0x1c] sm:$0xf]
    %v555 = vld [vmem:[%s1 + $0x20] sm:$0xf]
    %v556 = vld [vmem:[%s1 + $0x24] sm:$0xf]
    %v557 = vld [vmem:[%s1 + $0x28] sm:$0xf]
    %v558 = vld [vmem:[%s1 + $0x2c] sm:$0xf]
    %v559 = vld [vmem:[%s1 + $0x30] sm:$0xf]
    %v560 = vld [vmem:[%s1 + $0x34] sm:$0xf]
    %v561 = vld [vmem:[%s1 + $0x38] sm:$0xf]
    %v562 = vld [vmem:[%s1 + $0x3c] sm:$0xf]
    %v563 = vld [vmem:[%s2] sm:$0x1]
    %v565 = vperm.slane %v563, 0
    %v583 = vunpack.c.l.b16 %v547
    %v584 = vunpack.c.l.b16 %v548
    %v585 = vunpack.c.l.b16 %v549
    %v586 = vunpack.c.l.b16 %v550
    %v587 = vunpack.c.l.b16 %v551
    %v588 = vunpack.c.l.b16 %v552
    %v589 = vunpack.c.l.b16 %v553
    %v590 = vunpack.c.l.b16 %v554
    %v591 = vunpack.c.l.b16 %v555
    %v592 = vunpack.c.l.b16 %v556
    %v593 = vunpack.c.l.b16 %v557
    %v594 = vunpack.c.l.b16 %v558
    %v595 = vunpack.c.l.b16 %v559
    %v596 = vunpack.c.l.b16 %v560
    %v597 = vunpack.c.l.b16 %v561
    %v598 = vunpack.c.l.b16 %v562
    %v599 = vpack.c.b16 %v584, %v583
    %v600 = vpack.c.b16 %v586, %v585
    %v601 = vpack.c.b16 %v588, %v587
    %v602 = vpack.c.b16 %v590, %v589
    %v603 = vpack.c.b16 %v592, %v591
    %v604 = vpack.c.b16 %v594, %v593
    %v605 = vpack.c.b16 %v596, %v595
    %v606 = vpack.c.b16 %v598, %v597
    %615 = vmatpush.bf16.msra.mxu0 %v606
    %616 = vmatpush.bf16.msra.mxu0 %v605
    %617 = vmatpush.bf16.msra.mxu0 %v604
    %618 = vmatpush.bf16.msra.mxu0 %v603
    %619 = vmatpush.bf16.msra.mxu0 %v602
    %620 = vmatpush.bf16.msra.mxu0 %v601
    %621 = vmatpush.bf16.msra.mxu0 %v600
    %622 = vmatpush.bf16.msra.mxu0 %v599
    %623 = vmatmul.bf16.gmra.mxu0 %v546
    %v624 = vpop.f32.mrf.mxu0
    %v625 = vadd.f32 %v565, %v624
    %v626 = vpop.f32.mrf.mxu0
    %627 = vdwg.mxu0
    %v628 = vmax.f32 %v625, 0.0
    %v629 = vpack.c.bf16 %v628, %v628
    %630 = vst [vmem:[#allocation2 + $0x18] sm:$0xf] %v629
    %v631 = vld [vmem:[%s0 + $0x1c] sm:$0xf]
    %v632 = vld [vmem:[%s1] sm:$0xf]
    %v633 = vld [vmem:[%s1 + $0x4] sm:$0xf]
    %v634 = vld [vmem:[%s1 + $0x8] sm:$0xf]
    %v635 = vld [vmem:[%s1 + $0xc] sm:$0xf]
    %v636 = vld [vmem:[%s1 + $0x10] sm:$0xf]
    %v637 = vld [vmem:[%s1 + $0x14] sm:$0xf]
    %v638 = vld [vmem:[%s1 + $0x18] sm:$0xf]
    %v639 = vld [vmem:[%s1 + $0x1c] sm:$0xf]
    %v640 = vld [vmem:[%s1 + $0x20] sm:$0xf]
    %v641 = vld [vmem:[%s1 + $0x24] sm:$0xf]
    %v642 = vld [vmem:[%s1 + $0x28] sm:$0xf]
    %v643 = vld [vmem:[%s1 + $0x2c] sm:$0xf]
    %v644 = vld [vmem:[%s1 + $0x30] sm:$0xf]
    %v645 = vld [vmem:[%s1 + $0x34] sm:$0xf]
    %v646 = vld [vmem:[%s1 + $0x38] sm:$0xf]
    %v647 = vld [vmem:[%s1 + $0x3c] sm:$0xf]
    %v648 = vld [vmem:[%s2] sm:$0x1]
    %v650 = vperm.slane %v648, 0
    %v668 = vunpack.c.l.b16 %v632
    %v669 = vunpack.c.l.b16 %v633
    %v670 = vunpack.c.l.b16 %v634
    %v671 = vunpack.c.l.b16 %v635
    %v672 = vunpack.c.l.b16 %v636
    %v673 = vunpack.c.l.b16 %v637
    %v674 = vunpack.c.l.b16 %v638
    %v675 = vunpack.c.l.b16 %v639
    %v676 = vunpack.c.l.b16 %v640
    %v677 = vunpack.c.l.b16 %v641
    %v678 = vunpack.c.l.b16 %v642
    %v679 = vunpack.c.l.b16 %v643
    %v680 = vunpack.c.l.b16 %v644
    %v681 = vunpack.c.l.b16 %v645
    %v682 = vunpack.c.l.b16 %v646
    %v683 = vunpack.c.l.b16 %v647
    %v684 = vpack.c.b16 %v669, %v668
    %v685 = vpack.c.b16 %v671, %v670
    %v686 = vpack.c.b16 %v673, %v672
    %v687 = vpack.c.b16 %v675, %v674
    %v688 = vpack.c.b16 %v677, %v676
    %v689 = vpack.c.b16 %v679, %v678
    %v690 = vpack.c.b16 %v681, %v680
    %v691 = vpack.c.b16 %v683, %v682
    %700 = vmatpush.bf16.msra.mxu0 %v691
    %701 = vmatpush.bf16.msra.mxu0 %v690
    %702 = vmatpush.bf16.msra.mxu0 %v689
    %703 = vmatpush.bf16.msra.mxu0 %v688
    %704 = vmatpush.bf16.msra.mxu0 %v687
    %705 = vmatpush.bf16.msra.mxu0 %v686
    %706 = vmatpush.bf16.msra.mxu0 %v685
    %707 = vmatpush.bf16.msra.mxu0 %v684
    %708 = vmatmul.bf16.gmra.mxu0 %v631
    %v709 = vpop.f32.mrf.mxu0
    %v710 = vadd.f32 %v650, %v709
    %v711 = vpop.f32.mrf.mxu0
    %712 = vdwg.mxu0
    %v713 = vmax.f32 %v710, 0.0
    %v714 = vpack.c.bf16 %v713, %v713
    %715 = vst [vmem:[#allocation2 + $0x1c] sm:$0xf] %v714
    %v716 = vld [vmem:[#allocation2] sm:$0xff]
    %v717 = vld [vmem:[#allocation2 + $0x8] sm:$0xff]
    %v718 = vld [vmem:[#allocation2 + $0x10] sm:$0xff]
    %v719 = vld [vmem:[#allocation2 + $0x18] sm:$0xff]
    %v720 = vld [vmem:[#allocation3] sm:$0xf]
    %v721 = vld [vmem:[#allocation3 + $0x4] sm:$0xf]
    %v722 = vld [vmem:[#allocation3 + $0x8] sm:$0xf]
    %v723 = vld [vmem:[#allocation3 + $0xc] sm:$0xf]
    %v724 = vld [vmem:[#allocation3 + $0x10] sm:$0xf]
    %v725 = vld [vmem:[#allocation3 + $0x14] sm:$0xf]
    %v726 = vld [vmem:[#allocation3 + $0x18] sm:$0xf]
    %v727 = vld [vmem:[#allocation3 + $0x1c] sm:$0xf]
    %v728 = vld [vmem:[#allocation3 + $0x20] sm:$0xf]
    %v729 = vld [vmem:[#allocation3 + $0x24] sm:$0xf]
    %v730 = vld [vmem:[#allocation3 + $0x28] sm:$0xf]
    %v731 = vld [vmem:[#allocation3 + $0x2c] sm:$0xf]
    %v732 = vld [vmem:[#allocation3 + $0x30] sm:$0xf]
    %v733 = vld [vmem:[#allocation3 + $0x34] sm:$0xf]
    %v734 = vld [vmem:[#allocation3 + $0x38] sm:$0xf]
    %v735 = vld [vmem:[#allocation3 + $0x3c] sm:$0xf]
    %v736 = vld [vmem:[#allocation3 + $0x40] sm:$0xf]
    %v737 = vld [vmem:[#allocation3 + $0x44] sm:$0xf]
    %v738 = vld [vmem:[#allocation3 + $0x48] sm:$0xf]
    %v739 = vld [vmem:[#allocation3 + $0x4c] sm:$0xf]
    %v740 = vld [vmem:[#allocation3 + $0x50] sm:$0xf]
    %v741 = vld [vmem:[#allocation3 + $0x54] sm:$0xf]
    %v742 = vld [vmem:[#allocation3 + $0x58] sm:$0xf]
    %v743 = vld [vmem:[#allocation3 + $0x5c] sm:$0xf]
    %v744 = vld [vmem:[#allocation3 + $0x60] sm:$0xf]
    %v745 = vld [vmem:[#allocation3 + $0x64] sm:$0xf]
    %v746 = vld [vmem:[#allocation3 + $0x68] sm:$0xf]
    %v747 = vld [vmem:[#allocation3 + $0x6c] sm:$0xf]
    %v748 = vld [vmem:[#allocation3 + $0x70] sm:$0xf]
    %v749 = vld [vmem:[#allocation3 + $0x74] sm:$0xf]
    %v750 = vld [vmem:[#allocation3 + $0x78] sm:$0xf]
    %v751 = vld [vmem:[#allocation3 + $0x7c] sm:$0xf]
    %v752 = vld [vmem:[#allocation3 + $0x80] sm:$0xf]
    %v753 = vld [vmem:[#allocation3 + $0x84] sm:$0xf]
    %v754 = vld [vmem:[#allocation3 + $0x88] sm:$0xf]
    %v755 = vld [vmem:[#allocation3 + $0x8c] sm:$0xf]
    %v756 = vld [vmem:[#allocation3 + $0x90] sm:$0xf]
    %v757 = vld [vmem:[#allocation3 + $0x94] sm:$0xf]
    %v758 = vld [vmem:[#allocation3 + $0x98] sm:$0xf]
    %v759 = vld [vmem:[#allocation3 + $0x9c] sm:$0xf]
    %v760 = vld [vmem:[#allocation3 + $0xa0] sm:$0xf]
    %v761 = vld [vmem:[#allocation3 + $0xa4] sm:$0xf]
    %v762 = vld [vmem:[#allocation3 + $0xa8] sm:$0xf]
    %v763 = vld [vmem:[#allocation3 + $0xac] sm:$0xf]
    %v764 = vld [vmem:[#allocation3 + $0xb0] sm:$0xf]
    %v765 = vld [vmem:[#allocation3 + $0xb4] sm:$0xf]
    %v766 = vld [vmem:[#allocation3 + $0xb8] sm:$0xf]
    %v767 = vld [vmem:[#allocation3 + $0xbc] sm:$0xf]
    %v768 = vld [vmem:[#allocation3 + $0xc0] sm:$0xf]
    %v769 = vld [vmem:[#allocation3 + $0xc4] sm:$0xf]
    %v770 = vld [vmem:[#allocation3 + $0xc8] sm:$0xf]
    %v771 = vld [vmem:[#allocation3 + $0xcc] sm:$0xf]
    %v772 = vld [vmem:[#allocation3 + $0xd0] sm:$0xf]
    %v773 = vld [vmem:[#allocation3 + $0xd4] sm:$0xf]
    %v774 = vld [vmem:[#allocation3 + $0xd8] sm:$0xf]
    %v775 = vld [vmem:[#allocation3 + $0xdc] sm:$0xf]
    %v776 = vld [vmem:[#allocation3 + $0xe0] sm:$0xf]
    %v777 = vld [vmem:[#allocation3 + $0xe4] sm:$0xf]
    %v778 = vld [vmem:[#allocation3 + $0xe8] sm:$0xf]
    %v779 = vld [vmem:[#allocation3 + $0xec] sm:$0xf]
    %v780 = vld [vmem:[#allocation3 + $0xf0] sm:$0xf]
    %v781 = vld [vmem:[#allocation3 + $0xf4] sm:$0xf]
    %v782 = vld [vmem:[#allocation3 + $0xf8] sm:$0xf]
    %v783 = vld [vmem:[#allocation3 + $0xfc] sm:$0xf]
    %v784 = vld [vmem:[#allocation3 + $0x100] sm:$0xf]
    %v785 = vld [vmem:[#allocation3 + $0x104] sm:$0xf]
    %v786 = vld [vmem:[#allocation3 + $0x108] sm:$0xf]
    %v787 = vld [vmem:[#allocation3 + $0x10c] sm:$0xf]
    %v788 = vld [vmem:[#allocation3 + $0x110] sm:$0xf]
    %v789 = vld [vmem:[#allocation3 + $0x114] sm:$0xf]
    %v790 = vld [vmem:[#allocation3 + $0x118] sm:$0xf]
    %v791 = vld [vmem:[#allocation3 + $0x11c] sm:$0xf]
    %v792 = vld [vmem:[#allocation3 + $0x120] sm:$0xf]
    %v793 = vld [vmem:[#allocation3 + $0x124] sm:$0xf]
    %v794 = vld [vmem:[#allocation3 + $0x128] sm:$0xf]
    %v795 = vld [vmem:[#allocation3 + $0x12c] sm:$0xf]
    %v796 = vld [vmem:[#allocation3 + $0x130] sm:$0xf]
    %v797 = vld [vmem:[#allocation3 + $0x134] sm:$0xf]
    %v798 = vld [vmem:[#allocation3 + $0x138] sm:$0xf]
    %v799 = vld [vmem:[#allocation3 + $0x13c] sm:$0xf]
    %v800 = vld [vmem:[#allocation3 + $0x140] sm:$0xf]
    %v801 = vld [vmem:[#allocation3 + $0x144] sm:$0xf]
    %v802 = vld [vmem:[#allocation3 + $0x148] sm:$0xf]
    %v803 = vld [vmem:[#allocation3 + $0x14c] sm:$0xf]
    %v804 = vld [vmem:[#allocation3 + $0x150] sm:$0xf]
    %v805 = vld [vmem:[#allocation3 + $0x154] sm:$0xf]
    %v806 = vld [vmem:[#allocation3 + $0x158] sm:$0xf]
    %v807 = vld [vmem:[#allocation3 + $0x15c] sm:$0xf]
    %v808 = vld [vmem:[#allocation3 + $0x160] sm:$0xf]
    %v809 = vld [vmem:[#allocation3 + $0x164] sm:$0xf]
    %v810 = vld [vmem:[#allocation3 + $0x168] sm:$0xf]
    %v811 = vld [vmem:[#allocation3 + $0x16c] sm:$0xf]
    %v812 = vld [vmem:[#allocation3 + $0x170] sm:$0xf]
    %v813 = vld [vmem:[#allocation3 + $0x174] sm:$0xf]
    %v814 = vld [vmem:[#allocation3 + $0x178] sm:$0xf]
    %v815 = vld [vmem:[#allocation3 + $0x17c] sm:$0xf]
    %v816 = vld [vmem:[#allocation3 + $0x180] sm:$0xf]
    %v817 = vld [vmem:[#allocation3 + $0x184] sm:$0xf]
    %v818 = vld [vmem:[#allocation3 + $0x188] sm:$0xf]
    %v819 = vld [vmem:[#allocation3 + $0x18c] sm:$0xf]
    %v820 = vld [vmem:[#allocation3 + $0x190] sm:$0xf]
    %v821 = vld [vmem:[#allocation3 + $0x194] sm:$0xf]
    %v822 = vld [vmem:[#allocation3 + $0x198] sm:$0xf]
    %v823 = vld [vmem:[#allocation3 + $0x19c] sm:$0xf]
    %v824 = vld [vmem:[#allocation3 + $0x1a0] sm:$0xf]
    %v825 = vld [vmem:[#allocation3 + $0x1a4] sm:$0xf]
    %v826 = vld [vmem:[#allocation3 + $0x1a8] sm:$0xf]
    %v827 = vld [vmem:[#allocation3 + $0x1ac] sm:$0xf]
    %v828 = vld [vmem:[#allocation3 + $0x1b0] sm:$0xf]
    %v829 = vld [vmem:[#allocation3 + $0x1b4] sm:$0xf]
    %v830 = vld [vmem:[#allocation3 + $0x1b8] sm:$0xf]
    %v831 = vld [vmem:[#allocation3 + $0x1bc] sm:$0xf]
    %v832 = vld [vmem:[#allocation3 + $0x1c0] sm:$0xf]
    %v833 = vld [vmem:[#allocation3 + $0x1c4] sm:$0xf]
    %v834 = vld [vmem:[#allocation3 + $0x1c8] sm:$0xf]
    %v835 = vld [vmem:[#allocation3 + $0x1cc] sm:$0xf]
    %v836 = vld [vmem:[#allocation3 + $0x1d0] sm:$0xf]
    %v837 = vld [vmem:[#allocation3 + $0x1d4] sm:$0xf]
    %v838 = vld [vmem:[#allocation3 + $0x1d8] sm:$0xf]
    %v839 = vld [vmem:[#allocation3 + $0x1dc] sm:$0xf]
    %v840 = vld [vmem:[#allocation3 + $0x1e0] sm:$0xf]
    %v841 = vld [vmem:[#allocation3 + $0x1e4] sm:$0xf]
    %v842 = vld [vmem:[#allocation3 + $0x1e8] sm:$0xf]
    %v843 = vld [vmem:[#allocation3 + $0x1ec] sm:$0xf]
    %v844 = vld [vmem:[#allocation3 + $0x1f0] sm:$0xf]
    %v845 = vld [vmem:[#allocation3 + $0x1f4] sm:$0xf]
    %v846 = vld [vmem:[#allocation3 + $0x1f8] sm:$0xf]
    %v847 = vld [vmem:[#allocation3 + $0x1fc] sm:$0xf]
    %v848 = vld [vmem:[%s4] sm:$0x1]
    %v850 = vperm.slane %v848, 0
    %v856 = vunpack.c.l.b16 %v716
    %v857 = vunpack.c.h.b16 %v716
    %v858 = vunpack.c.l.b16 %v717
    %v859 = vunpack.c.h.b16 %v717
    %v860 = vunpack.c.l.b16 %v718
    %v861 = vunpack.c.h.b16 %v718
    %v862 = vunpack.c.l.b16 %v719
    %v863 = vunpack.c.h.b16 %v719
    %v864 = vpack.c.b16 %v856, %v856
    %v865 = vpack.c.b16 %v857, %v857
    %v866 = vpack.c.b16 %v858, %v858
    %v867 = vpack.c.b16 %v859, %v859
    %v868 = vpack.c.b16 %v860, %v860
    %v869 = vpack.c.b16 %v861, %v861
    %v870 = vpack.c.b16 %v862, %v862
    %v871 = vpack.c.b16 %v863, %v863
    %v1008 = vunpack.c.l.b16 %v720
    %v1009 = vunpack.c.l.b16 %v721
    %v1010 = vunpack.c.l.b16 %v722
    %v1011 = vunpack.c.l.b16 %v723
    %v1012 = vunpack.c.l.b16 %v724
    %v1013 = vunpack.c.l.b16 %v725
    %v1014 = vunpack.c.l.b16 %v726
    %v1015 = vunpack.c.l.b16 %v727
    %v1016 = vunpack.c.l.b16 %v728
    %v1017 = vunpack.c.l.b16 %v729
    %v1018 = vunpack.c.l.b16 %v730
    %v1019 = vunpack.c.l.b16 %v731
    %v1020 = vunpack.c.l.b16 %v732
    %v1021 = vunpack.c.l.b16 %v733
    %v1022 = vunpack.c.l.b16 %v734
    %v1023 = vunpack.c.l.b16 %v735
    %v1024 = vunpack.c.l.b16 %v736
    %v1025 = vunpack.c.l.b16 %v737
    %v1026 = vunpack.c.l.b16 %v738
    %v1027 = vunpack.c.l.b16 %v739
    %v1028 = vunpack.c.l.b16 %v740
    %v1029 = vunpack.c.l.b16 %v741
    %v1030 = vunpack.c.l.b16 %v742
    %v1031 = vunpack.c.l.b16 %v743
    %v1032 = vunpack.c.l.b16 %v744
    %v1033 = vunpack.c.l.b16 %v745
    %v1034 = vunpack.c.l.b16 %v746
    %v1035 = vunpack.c.l.b16 %v747
    %v1036 = vunpack.c.l.b16 %v748
    %v1037 = vunpack.c.l.b16 %v749
    %v1038 = vunpack.c.l.b16 %v750
    %v1039 = vunpack.c.l.b16 %v751
    %v1040 = vunpack.c.l.b16 %v752
    %v1041 = vunpack.c.l.b16 %v753
    %v1042 = vunpack.c.l.b16 %v754
    %v1043 = vunpack.c.l.b16 %v755
    %v1044 = vunpack.c.l.b16 %v756
    %v1045 = vunpack.c.l.b16 %v757
    %v1046 = vunpack.c.l.b16 %v758
    %v1047 = vunpack.c.l.b16 %v759
    %v1048 = vunpack.c.l.b16 %v760
    %v1049 = vunpack.c.l.b16 %v761
    %v1050 = vunpack.c.l.b16 %v762
    %v1051 = vunpack.c.l.b16 %v763
    %v1052 = vunpack.c.l.b16 %v764
    %v1053 = vunpack.c.l.b16 %v765
    %v1054 = vunpack.c.l.b16 %v766
    %v1055 = vunpack.c.l.b16 %v767
    %v1056 = vunpack.c.l.b16 %v768
    %v1057 = vunpack.c.l.b16 %v769
    %v1058 = vunpack.c.l.b16 %v770
    %v1059 = vunpack.c.l.b16 %v771
    %v1060 = vunpack.c.l.b16 %v772
    %v1061 = vunpack.c.l.b16 %v773
    %v1062 = vunpack.c.l.b16 %v774
    %v1063 = vunpack.c.l.b16 %v775
    %v1064 = vunpack.c.l.b16 %v776
    %v1065 = vunpack.c.l.b16 %v777
    %v1066 = vunpack.c.l.b16 %v778
    %v1067 = vunpack.c.l.b16 %v779
    %v1068 = vunpack.c.l.b16 %v780
    %v1069 = vunpack.c.l.b16 %v781
    %v1070 = vunpack.c.l.b16 %v782
    %v1071 = vunpack.c.l.b16 %v783
    %v1072 = vunpack.c.l.b16 %v784
    %v1073 = vunpack.c.l.b16 %v785
    %v1074 = vunpack.c.l.b16 %v786
    %v1075 = vunpack.c.l.b16 %v787
    %v1076 = vunpack.c.l.b16 %v788
    %v1077 = vunpack.c.l.b16 %v789
    %v1078 = vunpack.c.l.b16 %v790
    %v1079 = vunpack.c.l.b16 %v791
    %v1080 = vunpack.c.l.b16 %v792
    %v1081 = vunpack.c.l.b16 %v793
    %v1082 = vunpack.c.l.b16 %v794
    %v1083 = vunpack.c.l.b16 %v795
    %v1084 = vunpack.c.l.b16 %v796
    %v1085 = vunpack.c.l.b16 %v797
    %v1086 = vunpack.c.l.b16 %v798
    %v1087 = vunpack.c.l.b16 %v799
    %v1088 = vunpack.c.l.b16 %v800
    %v1089 = vunpack.c.l.b16 %v801
    %v1090 = vunpack.c.l.b16 %v802
    %v1091 = vunpack.c.l.b16 %v803
    %v1092 = vunpack.c.l.b16 %v804
    %v1093 = vunpack.c.l.b16 %v805
    %v1094 = vunpack.c.l.b16 %v806
    %v1095 = vunpack.c.l.b16 %v807
    %v1096 = vunpack.c.l.b16 %v808
    %v1097 = vunpack.c.l.b16 %v809
    %v1098 = vunpack.c.l.b16 %v810
    %v1099 = vunpack.c.l.b16 %v811
    %v1100 = vunpack.c.l.b16 %v812
    %v1101 = vunpack.c.l.b16 %v813
    %v1102 = vunpack.c.l.b16 %v814
    %v1103 = vunpack.c.l.b16 %v815
    %v1104 = vunpack.c.l.b16 %v816
    %v1105 = vunpack.c.l.b16 %v817
    %v1106 = vunpack.c.l.b16 %v818
    %v1107 = vunpack.c.l.b16 %v819
    %v1108 = vunpack.c.l.b16 %v820
    %v1109 = vunpack.c.l.b16 %v821
    %v1110 = vunpack.c.l.b16 %v822
    %v1111 = vunpack.c.l.b16 %v823
    %v1112 = vunpack.c.l.b16 %v824
    %v1113 = vunpack.c.l.b16 %v825
    %v1114 = vunpack.c.l.b16 %v826
    %v1115 = vunpack.c.l.b16 %v827
    %v1116 = vunpack.c.l.b16 %v828
    %v1117 = vunpack.c.l.b16 %v829
    %v1118 = vunpack.c.l.b16 %v830
    %v1119 = vunpack.c.l.b16 %v831
    %v1120 = vunpack.c.l.b16 %v832
    %v1121 = vunpack.c.l.b16 %v833
    %v1122 = vunpack.c.l.b16 %v834
    %v1123 = vunpack.c.l.b16 %v835
    %v1124 = vunpack.c.l.b16 %v836
    %v1125 = vunpack.c.l.b16 %v837
    %v1126 = vunpack.c.l.b16 %v838
    %v1127 = vunpack.c.l.b16 %v839
    %v1128 = vunpack.c.l.b16 %v840
    %v1129 = vunpack.c.l.b16 %v841
    %v1130 = vunpack.c.l.b16 %v842
    %v1131 = vunpack.c.l.b16 %v843
    %v1132 = vunpack.c.l.b16 %v844
    %v1133 = vunpack.c.l.b16 %v845
    %v1134 = vunpack.c.l.b16 %v846
    %v1135 = vunpack.c.l.b16 %v847
    %v1136 = vpack.c.b16 %v1009, %v1008
    %v1137 = vpack.c.b16 %v1011, %v1010
    %v1138 = vpack.c.b16 %v1013, %v1012
    %v1139 = vpack.c.b16 %v1015, %v1014
    %v1140 = vpack.c.b16 %v1017, %v1016
    %v1141 = vpack.c.b16 %v1019, %v1018
    %v1142 = vpack.c.b16 %v1021, %v1020
    %v1143 = vpack.c.b16 %v1023, %v1022
    %v1144 = vpack.c.b16 %v1025, %v1024
    %v1145 = vpack.c.b16 %v1027, %v1026
    %v1146 = vpack.c.b16 %v1029, %v1028
    %v1147 = vpack.c.b16 %v1031, %v1030
    %v1148 = vpack.c.b16 %v1033, %v1032
    %v1149 = vpack.c.b16 %v1035, %v1034
    %v1150 = vpack.c.b16 %v1037, %v1036
    %v1151 = vpack.c.b16 %v1039, %v1038
    %v1152 = vpack.c.b16 %v1041, %v1040
    %v1153 = vpack.c.b16 %v1043, %v1042
    %v1154 = vpack.c.b16 %v1045, %v1044
    %v1155 = vpack.c.b16 %v1047, %v1046
    %v1156 = vpack.c.b16 %v1049, %v1048
    %v1157 = vpack.c.b16 %v1051, %v1050
    %v1158 = vpack.c.b16 %v1053, %v1052
    %v1159 = vpack.c.b16 %v1055, %v1054
    %v1160 = vpack.c.b16 %v1057, %v1056
    %v1161 = vpack.c.b16 %v1059, %v1058
    %v1162 = vpack.c.b16 %v1061, %v1060
    %v1163 = vpack.c.b16 %v1063, %v1062
    %v1164 = vpack.c.b16 %v1065, %v1064
    %v1165 = vpack.c.b16 %v1067, %v1066
    %v1166 = vpack.c.b16 %v1069, %v1068
    %v1167 = vpack.c.b16 %v1071, %v1070
    %v1168 = vpack.c.b16 %v1073, %v1072
    %v1169 = vpack.c.b16 %v1075, %v1074
    %v1170 = vpack.c.b16 %v1077, %v1076
    %v1171 = vpack.c.b16 %v1079, %v1078
    %v1172 = vpack.c.b16 %v1081, %v1080
    %v1173 = vpack.c.b16 %v1083, %v1082
    %v1174 = vpack.c.b16 %v1085, %v1084
    %v1175 = vpack.c.b16 %v1087, %v1086
    %v1176 = vpack.c.b16 %v1089, %v1088
    %v1177 = vpack.c.b16 %v1091, %v1090
    %v1178 = vpack.c.b16 %v1093, %v1092
    %v1179 = vpack.c.b16 %v1095, %v1094
    %v1180 = vpack.c.b16 %v1097, %v1096
    %v1181 = vpack.c.b16 %v1099, %v1098
    %v1182 = vpack.c.b16 %v1101, %v1100
    %v1183 = vpack.c.b16 %v1103, %v1102
    %v1184 = vpack.c.b16 %v1105, %v1104
    %v1185 = vpack.c.b16 %v1107, %v1106
    %v1186 = vpack.c.b16 %v1109, %v1108
    %v1187 = vpack.c.b16 %v1111, %v1110
    %v1188 = vpack.c.b16 %v1113, %v1112
    %v1189 = vpack.c.b16 %v1115, %v1114
    %v1190 = vpack.c.b16 %v1117, %v1116
    %v1191 = vpack.c.b16 %v1119, %v1118
    %v1192 = vpack.c.b16 %v1121, %v1120
    %v1193 = vpack.c.b16 %v1123, %v1122
    %v1194 = vpack.c.b16 %v1125, %v1124
    %v1195 = vpack.c.b16 %v1127, %v1126
    %v1196 = vpack.c.b16 %v1129, %v1128
    %v1197 = vpack.c.b16 %v1131, %v1130
    %v1198 = vpack.c.b16 %v1133, %v1132
    %v1199 = vpack.c.b16 %v1135, %v1134
    %1264 = vmatpush.bf16.msra.mxu0 %v1143
    %1265 = vmatpush.bf16.msra.mxu0 %v1142
    %1266 = vmatpush.bf16.msra.mxu0 %v1141
    %1267 = vmatpush.bf16.msra.mxu0 %v1140
    %1268 = vmatpush.bf16.msra.mxu0 %v1139
    %1269 = vmatpush.bf16.msra.mxu0 %v1138
    %1270 = vmatpush.bf16.msra.mxu0 %v1137
    %1271 = vmatpush.bf16.msra.mxu0 %v1136
    %1272 = vmatmul.bf16.gmra.mxu0 %v864
    %v1273 = vpop.f32.mrf.mxu0
    %v1274 = vadd.f32 %v850, %v1273
    %v1275 = vpop.f32.mrf.mxu0
    %1276 = vdwg.mxu0
    %1277 = vmatpush.bf16.msra.mxu0 %v1151
    %1278 = vmatpush.bf16.msra.mxu0 %v1150
    %1279 = vmatpush.bf16.msra.mxu0 %v1149
    %1280 = vmatpush.bf16.msra.mxu0 %v1148
    %1281 = vmatpush.bf16.msra.mxu0 %v1147
    %1282 = vmatpush.bf16.msra.mxu0 %v1146
    %1283 = vmatpush.bf16.msra.mxu0 %v1145
    %1284 = vmatpush.bf16.msra.mxu0 %v1144
    %1285 = vmatmul.bf16.gmra.mxu0 %v865
    %v1286 = vpop.f32.mrf.mxu0
    %v1287 = vadd.f32 %v1274, %v1286
    %v1288 = vpop.f32.mrf.mxu0
    %1289 = vdwg.mxu0
    %1290 = vmatpush.bf16.msra.mxu0 %v1159
    %1291 = vmatpush.bf16.msra.mxu0 %v1158
    %1292 = vmatpush.bf16.msra.mxu0 %v1157
    %1293 = vmatpush.bf16.msra.mxu0 %v1156
    %1294 = vmatpush.bf16.msra.mxu0 %v1155
    %1295 = vmatpush.bf16.msra.mxu0 %v1154
    %1296 = vmatpush.bf16.msra.mxu0 %v1153
    %1297 = vmatpush.bf16.msra.mxu0 %v1152
    %1298 = vmatmul.bf16.gmra.mxu0 %v866
    %v1299 = vpop.f32.mrf.mxu0
    %v1300 = vadd.f32 %v1287, %v1299
    %v1301 = vpop.f32.mrf.mxu0
    %1302 = vdwg.mxu0
    %1303 = vmatpush.bf16.msra.mxu0 %v1167
    %1304 = vmatpush.bf16.msra.mxu0 %v1166
    %1305 = vmatpush.bf16.msra.mxu0 %v1165
    %1306 = vmatpush.bf16.msra.mxu0 %v1164
    %1307 = vmatpush.bf16.msra.mxu0 %v1163
    %1308 = vmatpush.bf16.msra.mxu0 %v1162
    %1309 = vmatpush.bf16.msra.mxu0 %v1161
    %1310 = vmatpush.bf16.msra.mxu0 %v1160
    %1311 = vmatmul.bf16.gmra.mxu0 %v867
    %v1312 = vpop.f32.mrf.mxu0
    %v1313 = vadd.f32 %v1300, %v1312
    %v1314 = vpop.f32.mrf.mxu0
    %1315 = vdwg.mxu0
    %1316 = vmatpush.bf16.msra.mxu0 %v1175
    %1317 = vmatpush.bf16.msra.mxu0 %v1174
    %1318 = vmatpush.bf16.msra.mxu0 %v1173
    %1319 = vmatpush.bf16.msra.mxu0 %v1172
    %1320 = vmatpush.bf16.msra.mxu0 %v1171
    %1321 = vmatpush.bf16.msra.mxu0 %v1170
    %1322 = vmatpush.bf16.msra.mxu0 %v1169
    %1323 = vmatpush.bf16.msra.mxu0 %v1168
    %1324 = vmatmul.bf16.gmra.mxu0 %v868
    %v1325 = vpop.f32.mrf.mxu0
    %v1326 = vadd.f32 %v1313, %v1325
    %v1327 = vpop.f32.mrf.mxu0
    %1328 = vdwg.mxu0
    %1329 = vmatpush.bf16.msra.mxu0 %v1183
    %1330 = vmatpush.bf16.msra.mxu0 %v1182
    %1331 = vmatpush.bf16.msra.mxu0 %v1181
    %1332 = vmatpush.bf16.msra.mxu0 %v1180
    %1333 = vmatpush.bf16.msra.mxu0 %v1179
    %1334 = vmatpush.bf16.msra.mxu0 %v1178
    %1335 = vmatpush.bf16.msra.mxu0 %v1177
    %1336 = vmatpush.bf16.msra.mxu0 %v1176
    %1337 = vmatmul.bf16.gmra.mxu0 %v869
    %v1338 = vpop.f32.mrf.mxu0
    %v1339 = vadd.f32 %v1326, %v1338
    %v1340 = vpop.f32.mrf.mxu0
    %1341 = vdwg.mxu0
    %1342 = vmatpush.bf16.msra.mxu0 %v1191
    %1343 = vmatpush.bf16.msra.mxu0 %v1190
    %1344 = vmatpush.bf16.msra.mxu0 %v1189
    %1345 = vmatpush.bf16.msra.mxu0 %v1188
    %1346 = vmatpush.bf16.msra.mxu0 %v1187
    %1347 = vmatpush.bf16.msra.mxu0 %v1186
    %1348 = vmatpush.bf16.msra.mxu0 %v1185
    %1349 = vmatpush.bf16.msra.mxu0 %v1184
    %1350 = vmatmul.bf16.gmra.mxu0 %v870
    %v1351 = vpop.f32.mrf.mxu0
    %v1352 = vadd.f32 %v1339, %v1351
    %v1353 = vpop.f32.mrf.mxu0
    %1354 = vdwg.mxu0
    %1355 = vmatpush.bf16.msra.mxu0 %v1199
    %1356 = vmatpush.bf16.msra.mxu0 %v1198
    %1357 = vmatpush.bf16.msra.mxu0 %v1197
    %1358 = vmatpush.bf16.msra.mxu0 %v1196
    %1359 = vmatpush.bf16.msra.mxu0 %v1195
    %1360 = vmatpush.bf16.msra.mxu0 %v1194
    %1361 = vmatpush.bf16.msra.mxu0 %v1193
    %1362 = vmatpush.bf16.msra.mxu0 %v1192
    %1363 = vmatmul.bf16.gmra.mxu0 %v871
    %v1364 = vpop.f32.mrf.mxu0
    %v1365 = vadd.f32 %v1352, %v1364
    %v1366 = vpop.f32.mrf.mxu0
    %1367 = vdwg.mxu0
    %1368 = vst [vmem:[%s5] sm:$0xff] %v1365
    // Predicated region
    $region26: #{forward.1} parent=1 // pred_check
      _
    $region27: #{forward.1} parent=1 // pred_check_branch
      %1370 = sbr.rel (0) target = $region29
    $region28: #{forward.1} parent=1 // pred_region
      _
    $region29: #{forward.1} parent=1 // pred_fallthru
      _
    // Predicated region
    $region30: #{forward.1} parent=1 // pred_check
      _
    $region31: #{forward.1} parent=1 // pred_check_branch
      %1372 = sbr.rel (0) target = $region33
    $region32: #{forward.1} parent=1 // pred_region
      _
    $region33: #{forward.1} parent=1 // pred_fallthru
      _
    %1373 = vsyncpa [#allocation4], 1

</llo_original>
